<compile_context>
chip_gen: v7x
topology: tpu7x:2x2x1
jax: 0.10.0
libtpu: 0.0.40
codegen_flags: <defaults>
</compile_context>

<pallas_src>
import functools

import jax
import jax.numpy as jnp
from jax import lax
from jax.experimental import pallas as pl
from jax.experimental.pallas import tpu as pltpu

LANES = 128
CHUNK_ROWS = 64            # 64 x 128 f32 = 8 vregs per live array


def _round_up(a, b):
    return ((a + b - 1) // b) * b


def mlp_kernel(x_ref, w1_ref, b1_ref, w2_ref, b2_ref, o_ref, *,
               hidden, num_chunks):
    # x_ref / o_ref: (blk, 128) f32 tiles in VMEM (lane-dense batch)
    # w1_ref, b1_ref, w2_ref: (H,) f32 in SMEM; b2_ref: (1,) f32 in SMEM
    def compute(x):
        # h = 0 peeled, b2 folded into the accumulator init.
        acc = w2_ref[0] * jnp.maximum(x * w1_ref[0] + b1_ref[0], 0.0) + b2_ref[0]
        # Statically unrolled over remaining hidden units: SMEM-scalar x vector
        # FMA + ReLU + accumulate, all f32 on the VPU (no MXU involvement).
        for h in range(1, hidden):
            acc = acc + w2_ref[h] * jnp.maximum(x * w1_ref[h] + b1_ref[h], 0.0)
        return acc

    if num_chunks == 1:
        o_ref[...] = compute(x_ref[...])
    else:
        # Row-chunk loop: bounds live vregs (~20) and avoids unrolled-code
        # blowup while the DMA tile stays large.
        def do_chunk(c, carry):
            r = pl.multiple_of(c * CHUNK_ROWS, CHUNK_ROWS)
            o_ref[pl.ds(r, CHUNK_ROWS), :] = compute(x_ref[pl.ds(r, CHUNK_ROWS), :])
            return carry

        lax.fori_loop(0, num_chunks, do_chunk, None)


def red_neuronal_forward(x, w1, b1, w2, b2, *, block_rows=2048):
    """Forward pass of RedNeuronal.

    x:  (N, 1) float32
    w1: (H, 1) float32  (torch hidden.weight)
    b1: (H,)   float32  (torch hidden.bias)
    w2: (1, H) float32  (torch output.weight)
    b2: (1,)   float32  (torch output.bias)
    returns (N, 1) float32
    """
    N = x.shape[0]
    H = w1.shape[0]

    rows = max(1, pl.cdiv(N, LANES))          # lane-dense batch rows
    rows8 = _round_up(rows, 8)

    # --- tile-size selection -------------------------------------------------
    # Clamp requested tile to [256, 4096] rows, multiple of 8 sublanes, never
    # larger than the data.
    blk = _round_up(min(max(block_rows, 256), 4096), 8)
    blk = min(blk, rows8)
    # Guarantee >=2 grid steps when the batch allows it, so the "parallel"
    # axis shards across both TensorCores on v7x.
    if rows8 >= 2 * 8:
        blk = min(blk, _round_up(pl.cdiv(rows8, 2), 8))
    # Tiles larger than one chunk must hold a whole number of 64-row chunks.
    if blk > CHUNK_ROWS:
        blk = _round_up(blk, CHUNK_ROWS)
    num_chunks = max(1, blk // CHUNK_ROWS)

    rows_p = _round_up(rows, blk)             # grid divides evenly
    total = rows_p * LANES
    grid = (rows_p // blk,)

    # --- lane-dense relayout: (N,1) -> zero-padded (rows_p, 128) -------------
    # Pad/slice are skipped when N already fills the tiles; callers that can
    # supply x pre-padded as (rows_p, 128) avoid this extra HBM pass entirely.
    xf = x.reshape(-1).astype(jnp.float32)
    pad = total - N
    xp = (jnp.pad(xf, (0, pad)) if pad else xf).reshape(rows_p, LANES)

    # --- tiny parameters as flat f32 vectors for SMEM -------------------------
    w1f = w1.reshape(-1).astype(jnp.float32)   # (H,)
    b1f = b1.reshape(-1).astype(jnp.float32)   # (H,)
    w2f = w2.reshape(-1).astype(jnp.float32)   # (H,)
    b2f = b2.reshape(-1).astype(jnp.float32)   # (1,)

    smem = pl.BlockSpec(memory_space=pltpu.MemorySpace.SMEM)
    tile = pl.BlockSpec((blk, LANES), lambda i: (i, 0))

    out = pl.pallas_call(
        functools.partial(mlp_kernel, hidden=H, num_chunks=num_chunks),
        out_shape=jax.ShapeDtypeStruct((rows_p, LANES), jnp.float32),
        grid=grid,
        in_specs=[tile, smem, smem, smem, smem],
        out_specs=pl.BlockSpec((blk, LANES), lambda i: (i, 0)),
        compiler_params=pltpu.CompilerParams(
            dimension_semantics=("parallel",),
            vmem_limit_bytes=32 * 1024 * 1024,
        ),
    )(xp, w1f, b1f, w2f, b2f)

    y = out.reshape(-1)
    if pad:
        y = y[:N]
    return y.reshape(N, 1)


def init_params(key, hidden):
    """Deterministic init matching torch.nn.Linear defaults
    (uniform(-1/sqrt(fan_in), 1/sqrt(fan_in)))."""
    k1, k2, k3, k4 = jax.random.split(key, 4)
    bound1 = 1.0  # fan_in = 1
    w1 = jax.random.uniform(k1, (hidden, 1), jnp.float32, -bound1, bound1)
    b1 = jax.random.uniform(k2, (hidden,), jnp.float32, -bound1, bound1)
    bound2 = 1.0 / jnp.sqrt(hidden)
    w2 = jax.random.uniform(k3, (1, hidden), jnp.float32, -bound2, bound2)
    b2 = jax.random.uniform(k4, (1,), jnp.float32, -bound2, bound2)
    return w1, b1, w2, b2


def _reference(x, w1, b1, w2, b2):
    return jnp.maximum(x @ w1.T + b1, 0.0) @ w2.T + b2


if __name__ == "__main__":
    key = jax.random.PRNGKey(0)
    k_params, k1, k2, k3 = jax.random.split(key, 4)

    hidden = 32
    w1, b1, w2, b2 = init_params(k_params, hidden)

    # Small batch: single tile, single grid step.
    x_small = jax.random.normal(k1, (8, 1), jnp.float32)
    out_small = jax.block_until_ready(
        red_neuronal_forward(x_small, w1, b1, w2, b2))
    ref_small = _reference(x_small, w1, b1, w2, b2)
    assert out_small.shape == (8, 1)
    assert jnp.allclose(out_small, ref_small, atol=1e-5, rtol=1e-5)

    # Ragged batch: 2-step "parallel" grid (v7x megacore path) + pad/slice tail.
    x_med = jax.random.normal(k2, (3000, 1), jnp.float32)
    out_med = jax.block_until_ready(
        red_neuronal_forward(x_med, w1, b1, w2, b2))
    ref_med = _reference(x_med, w1, b1, w2, b2)
    assert out_med.shape == (3000, 1)
    assert jnp.allclose(out_med, ref_med, atol=1e-5, rtol=1e-5)

    # Larger ragged batch: exercises the inner 64-row chunk loop (blk=128 ->
    # 2 chunks per tile) plus the 2-step grid and tail padding.
    x_big = jax.random.normal(k3, (20000, 1), jnp.float32)
    out_big = jax.block_until_ready(
        red_neuronal_forward(x_big, w1, b1, w2, b2))
    ref_big = _reference(x_big, w1, b1, w2, b2)
    assert out_big.shape == (20000, 1)
    assert jnp.allclose(out_big, ref_big, atol=1e-5, rtol=1e-5)

    print("KERNEL_OK")
</pallas_src>

<mosaic_0001>
module attributes {stable_mosaic.version = 11 : i64} {
  func.func @mlp_kernel(%arg0: i32, %arg1: memref<8x128xf32, #tpu.memory_space<vmem>>, %arg2: memref<32xf32, #tpu.memory_space<smem>>, %arg3: memref<32xf32, #tpu.memory_space<smem>>, %arg4: memref<32xf32, #tpu.memory_space<smem>>, %arg5: memref<1xf32, #tpu.memory_space<smem>>, %arg6: memref<8x128xf32, #tpu.memory_space<vmem>>) attributes {dimension_semantics = [#tpu.dimension_semantics<parallel>], iteration_bounds = array<i64: 1>, scalar_prefetch = 0 : i64, scratch_operands = 0 : i64, tpu.core_type = #tpu.core_type<tc>, window_params = [{transform_indices = @transform_0, window_bounds = array<i64: 8, 128>}, {transform_indices = @transform_1, window_bounds = array<i64: 32>}, {transform_indices = @transform_2, window_bounds = array<i64: 32>}, {transform_indices = @transform_3, window_bounds = array<i64: 32>}, {transform_indices = @transform_4, window_bounds = array<i64: 1>}, {transform_indices = @transform_5, window_bounds = array<i64: 8, 128>}]} {
    %c0 = arith.constant 0 : index
    %c0_0 = arith.constant 0 : index
    %0 = vector.load %arg1[%c0, %c0_0] : memref<8x128xf32, #tpu.memory_space<vmem>>, vector<8x128xf32>
    %c0_1 = arith.constant 0 : index
    %1 = memref.load %arg4[%c0_1] : memref<32xf32, #tpu.memory_space<smem>>
    %c0_2 = arith.constant 0 : index
    %2 = memref.load %arg2[%c0_2] : memref<32xf32, #tpu.memory_space<smem>>
    %3 = vector.broadcast %2 : f32 to vector<8x128xf32>
    %4 = arith.mulf %0, %3 : vector<8x128xf32>
    %c0_3 = arith.constant 0 : index
    %5 = memref.load %arg3[%c0_3] : memref<32xf32, #tpu.memory_space<smem>>
    %6 = vector.broadcast %5 : f32 to vector<8x128xf32>
    %7 = arith.addf %4, %6 : vector<8x128xf32>
    %cst = arith.constant 0.000000e+00 : f32
    %8 = vector.broadcast %cst : f32 to vector<8x128xf32>
    %9 = arith.maximumf %7, %8 : vector<8x128xf32>
    %10 = vector.broadcast %1 : f32 to vector<8x128xf32>
    %11 = arith.mulf %10, %9 : vector<8x128xf32>
    %c0_4 = arith.constant 0 : index
    %12 = memref.load %arg5[%c0_4] : memref<1xf32, #tpu.memory_space<smem>>
    %13 = vector.broadcast %12 : f32 to vector<8x128xf32>
    %14 = arith.addf %11, %13 : vector<8x128xf32>
    %c1 = arith.constant 1 : index
    %15 = memref.load %arg4[%c1] : memref<32xf32, #tpu.memory_space<smem>>
    %c1_5 = arith.constant 1 : index
    %16 = memref.load %arg2[%c1_5] : memref<32xf32, #tpu.memory_space<smem>>
    %17 = vector.broadcast %16 : f32 to vector<8x128xf32>
    %18 = arith.mulf %0, %17 : vector<8x128xf32>
    %c1_6 = arith.constant 1 : index
    %19 = memref.load %arg3[%c1_6] : memref<32xf32, #tpu.memory_space<smem>>
    %20 = vector.broadcast %19 : f32 to vector<8x128xf32>
    %21 = arith.addf %18, %20 : vector<8x128xf32>
    %cst_7 = arith.constant 0.000000e+00 : f32
    %22 = vector.broadcast %cst_7 : f32 to vector<8x128xf32>
    %23 = arith.maximumf %21, %22 : vector<8x128xf32>
    %24 = vector.broadcast %15 : f32 to vector<8x128xf32>
    %25 = arith.mulf %24, %23 : vector<8x128xf32>
    %26 = arith.addf %14, %25 : vector<8x128xf32>
    %c2 = arith.constant 2 : index
    %27 = memref.load %arg4[%c2] : memref<32xf32, #tpu.memory_space<smem>>
    %c2_8 = arith.constant 2 : index
    %28 = memref.load %arg2[%c2_8] : memref<32xf32, #tpu.memory_space<smem>>
    %29 = vector.broadcast %28 : f32 to vector<8x128xf32>
    %30 = arith.mulf %0, %29 : vector<8x128xf32>
    %c2_9 = arith.constant 2 : index
    %31 = memref.load %arg3[%c2_9] : memref<32xf32, #tpu.memory_space<smem>>
    %32 = vector.broadcast %31 : f32 to vector<8x128xf32>
    %33 = arith.addf %30, %32 : vector<8x128xf32>
    %cst_10 = arith.constant 0.000000e+00 : f32
    %34 = vector.broadcast %cst_10 : f32 to vector<8x128xf32>
    %35 = arith.maximumf %33, %34 : vector<8x128xf32>
    %36 = vector.broadcast %27 : f32 to vector<8x128xf32>
    %37 = arith.mulf %36, %35 : vector<8x128xf32>
    %38 = arith.addf %26, %37 : vector<8x128xf32>
    %c3 = arith.constant 3 : index
    %39 = memref.load %arg4[%c3] : memref<32xf32, #tpu.memory_space<smem>>
    %c3_11 = arith.constant 3 : index
    %40 = memref.load %arg2[%c3_11] : memref<32xf32, #tpu.memory_space<smem>>
    %41 = vector.broadcast %40 : f32 to vector<8x128xf32>
    %42 = arith.mulf %0, %41 : vector<8x128xf32>
    %c3_12 = arith.constant 3 : index
    %43 = memref.load %arg3[%c3_12] : memref<32xf32, #tpu.memory_space<smem>>
    %44 = vector.broadcast %43 : f32 to vector<8x128xf32>
    %45 = arith.addf %42, %44 : vector<8x128xf32>
    %cst_13 = arith.constant 0.000000e+00 : f32
    %46 = vector.broadcast %cst_13 : f32 to vector<8x128xf32>
    %47 = arith.maximumf %45, %46 : vector<8x128xf32>
    %48 = vector.broadcast %39 : f32 to vector<8x128xf32>
    %49 = arith.mulf %48, %47 : vector<8x128xf32>
    %50 = arith.addf %38, %49 : vector<8x128xf32>
    %c4 = arith.constant 4 : index
    %51 = memref.load %arg4[%c4] : memref<32xf32, #tpu.memory_space<smem>>
    %c4_14 = arith.constant 4 : index
    %52 = memref.load %arg2[%c4_14] : memref<32xf32, #tpu.memory_space<smem>>
    %53 = vector.broadcast %52 : f32 to vector<8x128xf32>
    %54 = arith.mulf %0, %53 : vector<8x128xf32>
    %c4_15 = arith.constant 4 : index
    %55 = memref.load %arg3[%c4_15] : memref<32xf32, #tpu.memory_space<smem>>
    %56 = vector.broadcast %55 : f32 to vector<8x128xf32>
    %57 = arith.addf %54, %56 : vector<8x128xf32>
    %cst_16 = arith.constant 0.000000e+00 : f32
    %58 = vector.broadcast %cst_16 : f32 to vector<8x128xf32>
    %59 = arith.maximumf %57, %58 : vector<8x128xf32>
    %60 = vector.broadcast %51 : f32 to vector<8x128xf32>
    %61 = arith.mulf %60, %59 : vector<8x128xf32>
    %62 = arith.addf %50, %61 : vector<8x128xf32>
    %c5 = arith.constant 5 : index
    %63 = memref.load %arg4[%c5] : memref<32xf32, #tpu.memory_space<smem>>
    %c5_17 = arith.constant 5 : index
    %64 = memref.load %arg2[%c5_17] : memref<32xf32, #tpu.memory_space<smem>>
    %65 = vector.broadcast %64 : f32 to vector<8x128xf32>
    %66 = arith.mulf %0, %65 : vector<8x128xf32>
    %c5_18 = arith.constant 5 : index
    %67 = memref.load %arg3[%c5_18] : memref<32xf32, #tpu.memory_space<smem>>
    %68 = vector.broadcast %67 : f32 to vector<8x128xf32>
    %69 = arith.addf %66, %68 : vector<8x128xf32>
    %cst_19 = arith.constant 0.000000e+00 : f32
    %70 = vector.broadcast %cst_19 : f32 to vector<8x128xf32>
    %71 = arith.maximumf %69, %70 : vector<8x128xf32>
    %72 = vector.broadcast %63 : f32 to vector<8x128xf32>
    %73 = arith.mulf %72, %71 : vector<8x128xf32>
    %74 = arith.addf %62, %73 : vector<8x128xf32>
    %c6 = arith.constant 6 : index
    %75 = memref.load %arg4[%c6] : memref<32xf32, #tpu.memory_space<smem>>
    %c6_20 = arith.constant 6 : index
    %76 = memref.load %arg2[%c6_20] : memref<32xf32, #tpu.memory_space<smem>>
    %77 = vector.broadcast %76 : f32 to vector<8x128xf32>
    %78 = arith.mulf %0, %77 : vector<8x128xf32>
    %c6_21 = arith.constant 6 : index
    %79 = memref.load %arg3[%c6_21] : memref<32xf32, #tpu.memory_space<smem>>
    %80 = vector.broadcast %79 : f32 to vector<8x128xf32>
    %81 = arith.addf %78, %80 : vector<8x128xf32>
    %cst_22 = arith.constant 0.000000e+00 : f32
    %82 = vector.broadcast %cst_22 : f32 to vector<8x128xf32>
    %83 = arith.maximumf %81, %82 : vector<8x128xf32>
    %84 = vector.broadcast %75 : f32 to vector<8x128xf32>
    %85 = arith.mulf %84, %83 : vector<8x128xf32>
    %86 = arith.addf %74, %85 : vector<8x128xf32>
    %c7 = arith.constant 7 : index
    %87 = memref.load %arg4[%c7] : memref<32xf32, #tpu.memory_space<smem>>
    %c7_23 = arith.constant 7 : index
    %88 = memref.load %arg2[%c7_23] : memref<32xf32, #tpu.memory_space<smem>>
    %89 = vector.broadcast %88 : f32 to vector<8x128xf32>
    %90 = arith.mulf %0, %89 : vector<8x128xf32>
    %c7_24 = arith.constant 7 : index
    %91 = memref.load %arg3[%c7_24] : memref<32xf32, #tpu.memory_space<smem>>
    %92 = vector.broadcast %91 : f32 to vector<8x128xf32>
    %93 = arith.addf %90, %92 : vector<8x128xf32>
    %cst_25 = arith.constant 0.000000e+00 : f32
    %94 = vector.broadcast %cst_25 : f32 to vector<8x128xf32>
    %95 = arith.maximumf %93, %94 : vector<8x128xf32>
    %96 = vector.broadcast %87 : f32 to vector<8x128xf32>
    %97 = arith.mulf %96, %95 : vector<8x128xf32>
    %98 = arith.addf %86, %97 : vector<8x128xf32>
    %c8 = arith.constant 8 : index
    %99 = memref.load %arg4[%c8] : memref<32xf32, #tpu.memory_space<smem>>
    %c8_26 = arith.constant 8 : index
    %100 = memref.load %arg2[%c8_26] : memref<32xf32, #tpu.memory_space<smem>>
    %101 = vector.broadcast %100 : f32 to vector<8x128xf32>
    %102 = arith.mulf %0, %101 : vector<8x128xf32>
    %c8_27 = arith.constant 8 : index
    %103 = memref.load %arg3[%c8_27] : memref<32xf32, #tpu.memory_space<smem>>
    %104 = vector.broadcast %103 : f32 to vector<8x128xf32>
    %105 = arith.addf %102, %104 : vector<8x128xf32>
    %cst_28 = arith.constant 0.000000e+00 : f32
    %106 = vector.broadcast %cst_28 : f32 to vector<8x128xf32>
    %107 = arith.maximumf %105, %106 : vector<8x128xf32>
    %108 = vector.broadcast %99 : f32 to vector<8x128xf32>
    %109 = arith.mulf %108, %107 : vector<8x128xf32>
    %110 = arith.addf %98, %109 : vector<8x128xf32>
    %c9 = arith.constant 9 : index
    %111 = memref.load %arg4[%c9] : memref<32xf32, #tpu.memory_space<smem>>
    %c9_29 = arith.constant 9 : index
    %112 = memref.load %arg2[%c9_29] : memref<32xf32, #tpu.memory_space<smem>>
    %113 = vector.broadcast %112 : f32 to vector<8x128xf32>
    %114 = arith.mulf %0, %113 : vector<8x128xf32>
    %c9_30 = arith.constant 9 : index
    %115 = memref.load %arg3[%c9_30] : memref<32xf32, #tpu.memory_space<smem>>
    %116 = vector.broadcast %115 : f32 to vector<8x128xf32>
    %117 = arith.addf %114, %116 : vector<8x128xf32>
    %cst_31 = arith.constant 0.000000e+00 : f32
    %118 = vector.broadcast %cst_31 : f32 to vector<8x128xf32>
    %119 = arith.maximumf %117, %118 : vector<8x128xf32>
    %120 = vector.broadcast %111 : f32 to vector<8x128xf32>
    %121 = arith.mulf %120, %119 : vector<8x128xf32>
    %122 = arith.addf %110, %121 : vector<8x128xf32>
    %c10 = arith.constant 10 : index
    %123 = memref.load %arg4[%c10] : memref<32xf32, #tpu.memory_space<smem>>
    %c10_32 = arith.constant 10 : index
    %124 = memref.load %arg2[%c10_32] : memref<32xf32, #tpu.memory_space<smem>>
    %125 = vector.broadcast %124 : f32 to vector<8x128xf32>
    %126 = arith.mulf %0, %125 : vector<8x128xf32>
    %c10_33 = arith.constant 10 : index
    %127 = memref.load %arg3[%c10_33] : memref<32xf32, #tpu.memory_space<smem>>
    %128 = vector.broadcast %127 : f32 to vector<8x128xf32>
    %129 = arith.addf %126, %128 : vector<8x128xf32>
    %cst_34 = arith.constant 0.000000e+00 : f32
    %130 = vector.broadcast %cst_34 : f32 to vector<8x128xf32>
    %131 = arith.maximumf %129, %130 : vector<8x128xf32>
    %132 = vector.broadcast %123 : f32 to vector<8x128xf32>
    %133 = arith.mulf %132, %131 : vector<8x128xf32>
    %134 = arith.addf %122, %133 : vector<8x128xf32>
    %c11 = arith.constant 11 : index
    %135 = memref.load %arg4[%c11] : memref<32xf32, #tpu.memory_space<smem>>
    %c11_35 = arith.constant 11 : index
    %136 = memref.load %arg2[%c11_35] : memref<32xf32, #tpu.memory_space<smem>>
    %137 = vector.broadcast %136 : f32 to vector<8x128xf32>
    %138 = arith.mulf %0, %137 : vector<8x128xf32>
    %c11_36 = arith.constant 11 : index
    %139 = memref.load %arg3[%c11_36] : memref<32xf32, #tpu.memory_space<smem>>
    %140 = vector.broadcast %139 : f32 to vector<8x128xf32>
    %141 = arith.addf %138, %140 : vector<8x128xf32>
    %cst_37 = arith.constant 0.000000e+00 : f32
    %142 = vector.broadcast %cst_37 : f32 to vector<8x128xf32>
    %143 = arith.maximumf %141, %142 : vector<8x128xf32>
    %144 = vector.broadcast %135 : f32 to vector<8x128xf32>
    %145 = arith.mulf %144, %143 : vector<8x128xf32>
    %146 = arith.addf %134, %145 : vector<8x128xf32>
    %c12 = arith.constant 12 : index
    %147 = memref.load %arg4[%c12] : memref<32xf32, #tpu.memory_space<smem>>
    %c12_38 = arith.constant 12 : index
    %148 = memref.load %arg2[%c12_38] : memref<32xf32, #tpu.memory_space<smem>>
    %149 = vector.broadcast %148 : f32 to vector<8x128xf32>
    %150 = arith.mulf %0, %149 : vector<8x128xf32>
    %c12_39 = arith.constant 12 : index
    %151 = memref.load %arg3[%c12_39] : memref<32xf32, #tpu.memory_space<smem>>
    %152 = vector.broadcast %151 : f32 to vector<8x128xf32>
    %153 = arith.addf %150, %152 : vector<8x128xf32>
    %cst_40 = arith.constant 0.000000e+00 : f32
    %154 = vector.broadcast %cst_40 : f32 to vector<8x128xf32>
    %155 = arith.maximumf %153, %154 : vector<8x128xf32>
    %156 = vector.broadcast %147 : f32 to vector<8x128xf32>
    %157 = arith.mulf %156, %155 : vector<8x128xf32>
    %158 = arith.addf %146, %157 : vector<8x128xf32>
    %c13 = arith.constant 13 : index
    %159 = memref.load %arg4[%c13] : memref<32xf32, #tpu.memory_space<smem>>
    %c13_41 = arith.constant 13 : index
    %160 = memref.load %arg2[%c13_41] : memref<32xf32, #tpu.memory_space<smem>>
    %161 = vector.broadcast %160 : f32 to vector<8x128xf32>
    %162 = arith.mulf %0, %161 : vector<8x128xf32>
    %c13_42 = arith.constant 13 : index
    %163 = memref.load %arg3[%c13_42] : memref<32xf32, #tpu.memory_space<smem>>
    %164 = vector.broadcast %163 : f32 to vector<8x128xf32>
    %165 = arith.addf %162, %164 : vector<8x128xf32>
    %cst_43 = arith.constant 0.000000e+00 : f32
    %166 = vector.broadcast %cst_43 : f32 to vector<8x128xf32>
    %167 = arith.maximumf %165, %166 : vector<8x128xf32>
    %168 = vector.broadcast %159 : f32 to vector<8x128xf32>
    %169 = arith.mulf %168, %167 : vector<8x128xf32>
    %170 = arith.addf %158, %169 : vector<8x128xf32>
    %c14 = arith.constant 14 : index
    %171 = memref.load %arg4[%c14] : memref<32xf32, #tpu.memory_space<smem>>
    %c14_44 = arith.constant 14 : index
    %172 = memref.load %arg2[%c14_44] : memref<32xf32, #tpu.memory_space<smem>>
    %173 = vector.broadcast %172 : f32 to vector<8x128xf32>
    %174 = arith.mulf %0, %173 : vector<8x128xf32>
    %c14_45 = arith.constant 14 : index
    %175 = memref.load %arg3[%c14_45] : memref<32xf32, #tpu.memory_space<smem>>
    %176 = vector.broadcast %175 : f32 to vector<8x128xf32>
    %177 = arith.addf %174, %176 : vector<8x128xf32>
    %cst_46 = arith.constant 0.000000e+00 : f32
    %178 = vector.broadcast %cst_46 : f32 to vector<8x128xf32>
    %179 = arith.maximumf %177, %178 : vector<8x128xf32>
    %180 = vector.broadcast %171 : f32 to vector<8x128xf32>
    %181 = arith.mulf %180, %179 : vector<8x128xf32>
    %182 = arith.addf %170, %181 : vector<8x128xf32>
    %c15 = arith.constant 15 : index
    %183 = memref.load %arg4[%c15] : memref<32xf32, #tpu.memory_space<smem>>
    %c15_47 = arith.constant 15 : index
    %184 = memref.load %arg2[%c15_47] : memref<32xf32, #tpu.memory_space<smem>>
    %185 = vector.broadcast %184 : f32 to vector<8x128xf32>
    %186 = arith.mulf %0, %185 : vector<8x128xf32>
    %c15_48 = arith.constant 15 : index
    %187 = memref.load %arg3[%c15_48] : memref<32xf32, #tpu.memory_space<smem>>
    %188 = vector.broadcast %187 : f32 to vector<8x128xf32>
    %189 = arith.addf %186, %188 : vector<8x128xf32>
    %cst_49 = arith.constant 0.000000e+00 : f32
    %190 = vector.broadcast %cst_49 : f32 to vector<8x128xf32>
    %191 = arith.maximumf %189, %190 : vector<8x128xf32>
    %192 = vector.broadcast %183 : f32 to vector<8x128xf32>
    %193 = arith.mulf %192, %191 : vector<8x128xf32>
    %194 = arith.addf %182, %193 : vector<8x128xf32>
    %c16 = arith.constant 16 : index
    %195 = memref.load %arg4[%c16] : memref<32xf32, #tpu.memory_space<smem>>
    %c16_50 = arith.constant 16 : index
    %196 = memref.load %arg2[%c16_50] : memref<32xf32, #tpu.memory_space<smem>>
    %197 = vector.broadcast %196 : f32 to vector<8x128xf32>
    %198 = arith.mulf %0, %197 : vector<8x128xf32>
    %c16_51 = arith.constant 16 : index
    %199 = memref.load %arg3[%c16_51] : memref<32xf32, #tpu.memory_space<smem>>
    %200 = vector.broadcast %199 : f32 to vector<8x128xf32>
    %201 = arith.addf %198, %200 : vector<8x128xf32>
    %cst_52 = arith.constant 0.000000e+00 : f32
    %202 = vector.broadcast %cst_52 : f32 to vector<8x128xf32>
    %203 = arith.maximumf %201, %202 : vector<8x128xf32>
    %204 = vector.broadcast %195 : f32 to vector<8x128xf32>
    %205 = arith.mulf %204, %203 : vector<8x128xf32>
    %206 = arith.addf %194, %205 : vector<8x128xf32>
    %c17 = arith.constant 17 : index
    %207 = memref.load %arg4[%c17] : memref<32xf32, #tpu.memory_space<smem>>
    %c17_53 = arith.constant 17 : index
    %208 = memref.load %arg2[%c17_53] : memref<32xf32, #tpu.memory_space<smem>>
    %209 = vector.broadcast %208 : f32 to vector<8x128xf32>
    %210 = arith.mulf %0, %209 : vector<8x128xf32>
    %c17_54 = arith.constant 17 : index
    %211 = memref.load %arg3[%c17_54] : memref<32xf32, #tpu.memory_space<smem>>
    %212 = vector.broadcast %211 : f32 to vector<8x128xf32>
    %213 = arith.addf %210, %212 : vector<8x128xf32>
    %cst_55 = arith.constant 0.000000e+00 : f32
    %214 = vector.broadcast %cst_55 : f32 to vector<8x128xf32>
    %215 = arith.maximumf %213, %214 : vector<8x128xf32>
    %216 = vector.broadcast %207 : f32 to vector<8x128xf32>
    %217 = arith.mulf %216, %215 : vector<8x128xf32>
    %218 = arith.addf %206, %217 : vector<8x128xf32>
    %c18 = arith.constant 18 : index
    %219 = memref.load %arg4[%c18] : memref<32xf32, #tpu.memory_space<smem>>
    %c18_56 = arith.constant 18 : index
    %220 = memref.load %arg2[%c18_56] : memref<32xf32, #tpu.memory_space<smem>>
    %221 = vector.broadcast %220 : f32 to vector<8x128xf32>
    %222 = arith.mulf %0, %221 : vector<8x128xf32>
    %c18_57 = arith.constant 18 : index
    %223 = memref.load %arg3[%c18_57] : memref<32xf32, #tpu.memory_space<smem>>
    %224 = vector.broadcast %223 : f32 to vector<8x128xf32>
    %225 = arith.addf %222, %224 : vector<8x128xf32>
    %cst_58 = arith.constant 0.000000e+00 : f32
    %226 = vector.broadcast %cst_58 : f32 to vector<8x128xf32>
    %227 = arith.maximumf %225, %226 : vector<8x128xf32>
    %228 = vector.broadcast %219 : f32 to vector<8x128xf32>
    %229 = arith.mulf %228, %227 : vector<8x128xf32>
    %230 = arith.addf %218, %229 : vector<8x128xf32>
    %c19 = arith.constant 19 : index
    %231 = memref.load %arg4[%c19] : memref<32xf32, #tpu.memory_space<smem>>
    %c19_59 = arith.constant 19 : index
    %232 = memref.load %arg2[%c19_59] : memref<32xf32, #tpu.memory_space<smem>>
    %233 = vector.broadcast %232 : f32 to vector<8x128xf32>
    %234 = arith.mulf %0, %233 : vector<8x128xf32>
    %c19_60 = arith.constant 19 : index
    %235 = memref.load %arg3[%c19_60] : memref<32xf32, #tpu.memory_space<smem>>
    %236 = vector.broadcast %235 : f32 to vector<8x128xf32>
    %237 = arith.addf %234, %236 : vector<8x128xf32>
    %cst_61 = arith.constant 0.000000e+00 : f32
    %238 = vector.broadcast %cst_61 : f32 to vector<8x128xf32>
    %239 = arith.maximumf %237, %238 : vector<8x128xf32>
    %240 = vector.broadcast %231 : f32 to vector<8x128xf32>
    %241 = arith.mulf %240, %239 : vector<8x128xf32>
    %242 = arith.addf %230, %241 : vector<8x128xf32>
    %c20 = arith.constant 20 : index
    %243 = memref.load %arg4[%c20] : memref<32xf32, #tpu.memory_space<smem>>
    %c20_62 = arith.constant 20 : index
    %244 = memref.load %arg2[%c20_62] : memref<32xf32, #tpu.memory_space<smem>>
    %245 = vector.broadcast %244 : f32 to vector<8x128xf32>
    %246 = arith.mulf %0, %245 : vector<8x128xf32>
    %c20_63 = arith.constant 20 : index
    %247 = memref.load %arg3[%c20_63] : memref<32xf32, #tpu.memory_space<smem>>
    %248 = vector.broadcast %247 : f32 to vector<8x128xf32>
    %249 = arith.addf %246, %248 : vector<8x128xf32>
    %cst_64 = arith.constant 0.000000e+00 : f32
    %250 = vector.broadcast %cst_64 : f32 to vector<8x128xf32>
    %251 = arith.maximumf %249, %250 : vector<8x128xf32>
    %252 = vector.broadcast %243 : f32 to vector<8x128xf32>
    %253 = arith.mulf %252, %251 : vector<8x128xf32>
    %254 = arith.addf %242, %253 : vector<8x128xf32>
    %c21 = arith.constant 21 : index
    %255 = memref.load %arg4[%c21] : memref<32xf32, #tpu.memory_space<smem>>
    %c21_65 = arith.constant 21 : index
    %256 = memref.load %arg2[%c21_65] : memref<32xf32, #tpu.memory_space<smem>>
    %257 = vector.broadcast %256 : f32 to vector<8x128xf32>
    %258 = arith.mulf %0, %257 : vector<8x128xf32>
    %c21_66 = arith.constant 21 : index
    %259 = memref.load %arg3[%c21_66] : memref<32xf32, #tpu.memory_space<smem>>
    %260 = vector.broadcast %259 : f32 to vector<8x128xf32>
    %261 = arith.addf %258, %260 : vector<8x128xf32>
    %cst_67 = arith.constant 0.000000e+00 : f32
    %262 = vector.broadcast %cst_67 : f32 to vector<8x128xf32>
    %263 = arith.maximumf %261, %262 : vector<8x128xf32>
    %264 = vector.broadcast %255 : f32 to vector<8x128xf32>
    %265 = arith.mulf %264, %263 : vector<8x128xf32>
    %266 = arith.addf %254, %265 : vector<8x128xf32>
    %c22 = arith.constant 22 : index
    %267 = memref.load %arg4[%c22] : memref<32xf32, #tpu.memory_space<smem>>
    %c22_68 = arith.constant 22 : index
    %268 = memref.load %arg2[%c22_68] : memref<32xf32, #tpu.memory_space<smem>>
    %269 = vector.broadcast %268 : f32 to vector<8x128xf32>
    %270 = arith.mulf %0, %269 : vector<8x128xf32>
    %c22_69 = arith.constant 22 : index
    %271 = memref.load %arg3[%c22_69] : memref<32xf32, #tpu.memory_space<smem>>
    %272 = vector.broadcast %271 : f32 to vector<8x128xf32>
    %273 = arith.addf %270, %272 : vector<8x128xf32>
    %cst_70 = arith.constant 0.000000e+00 : f32
    %274 = vector.broadcast %cst_70 : f32 to vector<8x128xf32>
    %275 = arith.maximumf %273, %274 : vector<8x128xf32>
    %276 = vector.broadcast %267 : f32 to vector<8x128xf32>
    %277 = arith.mulf %276, %275 : vector<8x128xf32>
    %278 = arith.addf %266, %277 : vector<8x128xf32>
    %c23 = arith.constant 23 : index
    %279 = memref.load %arg4[%c23] : memref<32xf32, #tpu.memory_space<smem>>
    %c23_71 = arith.constant 23 : index
    %280 = memref.load %arg2[%c23_71] : memref<32xf32, #tpu.memory_space<smem>>
    %281 = vector.broadcast %280 : f32 to vector<8x128xf32>
    %282 = arith.mulf %0, %281 : vector<8x128xf32>
    %c23_72 = arith.constant 23 : index
    %283 = memref.load %arg3[%c23_72] : memref<32xf32, #tpu.memory_space<smem>>
    %284 = vector.broadcast %283 : f32 to vector<8x128xf32>
    %285 = arith.addf %282, %284 : vector<8x128xf32>
    %cst_73 = arith.constant 0.000000e+00 : f32
    %286 = vector.broadcast %cst_73 : f32 to vector<8x128xf32>
    %287 = arith.maximumf %285, %286 : vector<8x128xf32>
    %288 = vector.broadcast %279 : f32 to vector<8x128xf32>
    %289 = arith.mulf %288, %287 : vector<8x128xf32>
    %290 = arith.addf %278, %289 : vector<8x128xf32>
    %c24 = arith.constant 24 : index
    %291 = memref.load %arg4[%c24] : memref<32xf32, #tpu.memory_space<smem>>
    %c24_74 = arith.constant 24 : index
    %292 = memref.load %arg2[%c24_74] : memref<32xf32, #tpu.memory_space<smem>>
    %293 = vector.broadcast %292 : f32 to vector<8x128xf32>
    %294 = arith.mulf %0, %293 : vector<8x128xf32>
    %c24_75 = arith.constant 24 : index
    %295 = memref.load %arg3[%c24_75] : memref<32xf32, #tpu.memory_space<smem>>
    %296 = vector.broadcast %295 : f32 to vector<8x128xf32>
    %297 = arith.addf %294, %296 : vector<8x128xf32>
    %cst_76 = arith.constant 0.000000e+00 : f32
    %298 = vector.broadcast %cst_76 : f32 to vector<8x128xf32>
    %299 = arith.maximumf %297, %298 : vector<8x128xf32>
    %300 = vector.broadcast %291 : f32 to vector<8x128xf32>
    %301 = arith.mulf %300, %299 : vector<8x128xf32>
    %302 = arith.addf %290, %301 : vector<8x128xf32>
    %c25 = arith.constant 25 : index
    %303 = memref.load %arg4[%c25] : memref<32xf32, #tpu.memory_space<smem>>
    %c25_77 = arith.constant 25 : index
    %304 = memref.load %arg2[%c25_77] : memref<32xf32, #tpu.memory_space<smem>>
    %305 = vector.broadcast %304 : f32 to vector<8x128xf32>
    %306 = arith.mulf %0, %305 : vector<8x128xf32>
    %c25_78 = arith.constant 25 : index
    %307 = memref.load %arg3[%c25_78] : memref<32xf32, #tpu.memory_space<smem>>
    %308 = vector.broadcast %307 : f32 to vector<8x128xf32>
    %309 = arith.addf %306, %308 : vector<8x128xf32>
    %cst_79 = arith.constant 0.000000e+00 : f32
    %310 = vector.broadcast %cst_79 : f32 to vector<8x128xf32>
    %311 = arith.maximumf %309, %310 : vector<8x128xf32>
    %312 = vector.broadcast %303 : f32 to vector<8x128xf32>
    %313 = arith.mulf %312, %311 : vector<8x128xf32>
    %314 = arith.addf %302, %313 : vector<8x128xf32>
    %c26 = arith.constant 26 : index
    %315 = memref.load %arg4[%c26] : memref<32xf32, #tpu.memory_space<smem>>
    %c26_80 = arith.constant 26 : index
    %316 = memref.load %arg2[%c26_80] : memref<32xf32, #tpu.memory_space<smem>>
    %317 = vector.broadcast %316 : f32 to vector<8x128xf32>
    %318 = arith.mulf %0, %317 : vector<8x128xf32>
    %c26_81 = arith.constant 26 : index
    %319 = memref.load %arg3[%c26_81] : memref<32xf32, #tpu.memory_space<smem>>
    %320 = vector.broadcast %319 : f32 to vector<8x128xf32>
    %321 = arith.addf %318, %320 : vector<8x128xf32>
    %cst_82 = arith.constant 0.000000e+00 : f32
    %322 = vector.broadcast %cst_82 : f32 to vector<8x128xf32>
    %323 = arith.maximumf %321, %322 : vector<8x128xf32>
    %324 = vector.broadcast %315 : f32 to vector<8x128xf32>
    %325 = arith.mulf %324, %323 : vector<8x128xf32>
    %326 = arith.addf %314, %325 : vector<8x128xf32>
    %c27 = arith.constant 27 : index
    %327 = memref.load %arg4[%c27] : memref<32xf32, #tpu.memory_space<smem>>
    %c27_83 = arith.constant 27 : index
    %328 = memref.load %arg2[%c27_83] : memref<32xf32, #tpu.memory_space<smem>>
    %329 = vector.broadcast %328 : f32 to vector<8x128xf32>
    %330 = arith.mulf %0, %329 : vector<8x128xf32>
    %c27_84 = arith.constant 27 : index
    %331 = memref.load %arg3[%c27_84] : memref<32xf32, #tpu.memory_space<smem>>
    %332 = vector.broadcast %331 : f32 to vector<8x128xf32>
    %333 = arith.addf %330, %332 : vector<8x128xf32>
    %cst_85 = arith.constant 0.000000e+00 : f32
    %334 = vector.broadcast %cst_85 : f32 to vector<8x128xf32>
    %335 = arith.maximumf %333, %334 : vector<8x128xf32>
    %336 = vector.broadcast %327 : f32 to vector<8x128xf32>
    %337 = arith.mulf %336, %335 : vector<8x128xf32>
    %338 = arith.addf %326, %337 : vector<8x128xf32>
    %c28 = arith.constant 28 : index
    %339 = memref.load %arg4[%c28] : memref<32xf32, #tpu.memory_space<smem>>
    %c28_86 = arith.constant 28 : index
    %340 = memref.load %arg2[%c28_86] : memref<32xf32, #tpu.memory_space<smem>>
    %341 = vector.broadcast %340 : f32 to vector<8x128xf32>
    %342 = arith.mulf %0, %341 : vector<8x128xf32>
    %c28_87 = arith.constant 28 : index
    %343 = memref.load %arg3[%c28_87] : memref<32xf32, #tpu.memory_space<smem>>
    %344 = vector.broadcast %343 : f32 to vector<8x128xf32>
    %345 = arith.addf %342, %344 : vector<8x128xf32>
    %cst_88 = arith.constant 0.000000e+00 : f32
    %346 = vector.broadcast %cst_88 : f32 to vector<8x128xf32>
    %347 = arith.maximumf %345, %346 : vector<8x128xf32>
    %348 = vector.broadcast %339 : f32 to vector<8x128xf32>
    %349 = arith.mulf %348, %347 : vector<8x128xf32>
    %350 = arith.addf %338, %349 : vector<8x128xf32>
    %c29 = arith.constant 29 : index
    %351 = memref.load %arg4[%c29] : memref<32xf32, #tpu.memory_space<smem>>
    %c29_89 = arith.constant 29 : index
    %352 = memref.load %arg2[%c29_89] : memref<32xf32, #tpu.memory_space<smem>>
    %353 = vector.broadcast %352 : f32 to vector<8x128xf32>
    %354 = arith.mulf %0, %353 : vector<8x128xf32>
    %c29_90 = arith.constant 29 : index
    %355 = memref.load %arg3[%c29_90] : memref<32xf32, #tpu.memory_space<smem>>
    %356 = vector.broadcast %355 : f32 to vector<8x128xf32>
    %357 = arith.addf %354, %356 : vector<8x128xf32>
    %cst_91 = arith.constant 0.000000e+00 : f32
    %358 = vector.broadcast %cst_91 : f32 to vector<8x128xf32>
    %359 = arith.maximumf %357, %358 : vector<8x128xf32>
    %360 = vector.broadcast %351 : f32 to vector<8x128xf32>
    %361 = arith.mulf %360, %359 : vector<8x128xf32>
    %362 = arith.addf %350, %361 : vector<8x128xf32>
    %c30 = arith.constant 30 : index
    %363 = memref.load %arg4[%c30] : memref<32xf32, #tpu.memory_space<smem>>
    %c30_92 = arith.constant 30 : index
    %364 = memref.load %arg2[%c30_92] : memref<32xf32, #tpu.memory_space<smem>>
    %365 = vector.broadcast %364 : f32 to vector<8x128xf32>
    %366 = arith.mulf %0, %365 : vector<8x128xf32>
    %c30_93 = arith.constant 30 : index
    %367 = memref.load %arg3[%c30_93] : memref<32xf32, #tpu.memory_space<smem>>
    %368 = vector.broadcast %367 : f32 to vector<8x128xf32>
    %369 = arith.addf %366, %368 : vector<8x128xf32>
    %cst_94 = arith.constant 0.000000e+00 : f32
    %370 = vector.broadcast %cst_94 : f32 to vector<8x128xf32>
    %371 = arith.maximumf %369, %370 : vector<8x128xf32>
    %372 = vector.broadcast %363 : f32 to vector<8x128xf32>
    %373 = arith.mulf %372, %371 : vector<8x128xf32>
    %374 = arith.addf %362, %373 : vector<8x128xf32>
    %c31 = arith.constant 31 : index
    %375 = memref.load %arg4[%c31] : memref<32xf32, #tpu.memory_space<smem>>
    %c31_95 = arith.constant 31 : index
    %376 = memref.load %arg2[%c31_95] : memref<32xf32, #tpu.memory_space<smem>>
    %377 = vector.broadcast %376 : f32 to vector<8x128xf32>
    %378 = arith.mulf %0, %377 : vector<8x128xf32>
    %c31_96 = arith.constant 31 : index
    %379 = memref.load %arg3[%c31_96] : memref<32xf32, #tpu.memory_space<smem>>
    %380 = vector.broadcast %379 : f32 to vector<8x128xf32>
    %381 = arith.addf %378, %380 : vector<8x128xf32>
    %cst_97 = arith.constant 0.000000e+00 : f32
    %382 = vector.broadcast %cst_97 : f32 to vector<8x128xf32>
    %383 = arith.maximumf %381, %382 : vector<8x128xf32>
    %384 = vector.broadcast %375 : f32 to vector<8x128xf32>
    %385 = arith.mulf %384, %383 : vector<8x128xf32>
    %386 = arith.addf %374, %385 : vector<8x128xf32>
    %c0_98 = arith.constant 0 : index
    %c0_99 = arith.constant 0 : index
    %387 = vector.load %arg6[%c0_98, %c0_99] : memref<8x128xf32, #tpu.memory_space<vmem>>, vector<8x128xf32>
    tpu.vector_store %arg6[%c0_98, %c0_99], %386 {strides = array<i32>} : memref<8x128xf32, #tpu.memory_space<vmem>>, vector<8x128xf32>,
    return
  }
  func.func @transform_0(%arg0: i32) -> (i32, i32) {
    %c0_i32 = arith.constant 0 : i32
    %c0_i32_0 = arith.constant 0 : i32
    return %arg0, %c0_i32 : i32, i32
  }
  func.func @transform_1(%arg0: i32) -> i32 {
    %c0_i32 = arith.constant 0 : i32
    %c0_i32_0 = arith.constant 0 : i32
    return %c0_i32 : i32
  }
  func.func @transform_2(%arg0: i32) -> i32 {
    %c0_i32 = arith.constant 0 : i32
    %c0_i32_0 = arith.constant 0 : i32
    return %c0_i32 : i32
  }
  func.func @transform_3(%arg0: i32) -> i32 {
    %c0_i32 = arith.constant 0 : i32
    %c0_i32_0 = arith.constant 0 : i32
    return %c0_i32 : i32
  }
  func.func @transform_4(%arg0: i32) -> i32 {
    %c0_i32 = arith.constant 0 : i32
    %c0_i32_0 = arith.constant 0 : i32
    return %c0_i32 : i32
  }
  func.func @transform_5(%arg0: i32) -> (i32, i32) {
    %c0_i32 = arith.constant 0 : i32
    %c0_i32_0 = arith.constant 0 : i32
    return %arg0, %c0_i32 : i32, i32
  }
}

</mosaic_0001>

<llo_original>
// kernel: tpu_custom_call.1
$region0: #{tpu_custom_call.1}
  #allocation0 [shape = 'u32[]', space=smem, size = 0x4, offset = 0x4, fixed_abs, tag = 'smem constant byte address 0x4 - core index']
  #allocation1 [shape = 'u32[144,128]{1,0:T(1,128)}', space=vmem, size = 0x12000, scoped, tag = 'internal scratch']
  #allocation2 [shape = 'f32[1]{0:T(128)S(6)}', space=smem, size = 0x200, scoped, tag = 'scoped memory for tpu_custom_call.1']
  %s0 = inlined_call_operand.hbm [shape: f32[8,128], index: 0, kind: input, shape index: {}]
  %s1 = inlined_call_operand.vmem [shape: f32[32], index: 1, kind: input, shape index: {}]
  %s2 = inlined_call_operand.vmem [shape: f32[32], index: 2, kind: input, shape index: {}]
  %s3 = inlined_call_operand.vmem [shape: f32[32], index: 3, kind: input, shape index: {}]
  %s4 = inlined_call_operand.<no memory space> [shape: f32[1], index: 4, kind: input, shape index: {}]
  %s5 = inlined_call_operand.hbm [shape: f32[8,128], index: 5, kind: output, shape index: {}]
  %s6 = sld [smem:[#allocation0]]
  $region46: #{tpu_custom_call.1} parent=0
    _
  %s8 = ssub.s32 1, %s6
  %s9 = scalar_select 0, %s8, %s6
  %10 = sst [smem:[#allocation2]] %s4
  $region1: #{tpu_custom_call.1} parent=0
    #allocation3 [shape = 'u8[4096]{0}', space=vmem, size = 0x1000, scoped, tag = 'input window, operand 0, single buffered']
    #allocation4 [shape = 's32[1]{0}', space=sflag, size = 0x4, scoped, tag = 'scoped memory for tpu_custom_call.1']
    #allocation5 [shape = 's32[1]{0}', space=sflag, size = 0x4, scoped, tag = 'scoped memory for tpu_custom_call.1']
    #allocation6 [shape = 's32[1]{0}', space=sflag, size = 0x4, scoped, tag = 'scoped memory for tpu_custom_call.1']
    #allocation7 [shape = 'u8[512]{0}', space=smem, size = 0x200, scoped, tag = 'input window, operand 1, single buffered']
    #allocation8 [shape = 'u8[512]{0}', space=smem, size = 0x200, scoped, tag = 'input window, operand 2, single buffered']
    #allocation9 [shape = 's32[1]{0}', space=sflag, size = 0x4, scoped, tag = 'scoped memory for tpu_custom_call.1']
    #allocation10 [shape = 'u8[512]{0}', space=smem, size = 0x200, scoped, tag = 'input window, operand 3, single buffered']
    #allocation11 [shape = 'u8[4096]{0}', space=vmem, size = 0x1000, scoped, tag = 'output window, operand 0, single buffered']
    %11 = vsyncpa [#allocation4], 0
    %12 = vsyncpa [#allocation6], 0
    %13 = vsyncpa [#allocation9], 0
    %14 = vsyncpa [#allocation5], 0
    // Predicated region
    $region2: #{tpu_custom_call.1} parent=1 // pred_check
      _
    $region3: #{tpu_custom_call.1} parent=1 // pred_check_branch
      %16 = sbr.rel (0) target = $region5
    $region4: #{tpu_custom_call.1} parent=1 // pred_region
      %s18 = ssub.s32 128, 128
      %19 = vsyncadd [#allocation4], %s18
      %s21 = sshll.u32 [#allocation3], 4
      %s22 = int_to_ptr.vmem [resolvable:$true] %s21
      %24 = dma.hbm_to_vmem [thread:$0]  %s0, 128, %s22, [#allocation4]
    $region5: #{tpu_custom_call.1} parent=1 // pred_fallthru
      _
    // Predicated region
    $region6: #{tpu_custom_call.1} parent=1 // pred_check
      _
    $region7: #{tpu_custom_call.1} parent=1 // pred_check_branch
      %26 = sbr.rel (0) target = $region9
    $region8: #{tpu_custom_call.1} parent=1 // pred_region
      %s28 = ssub.s32 16, 16
      %29 = vsyncadd [#allocation6], %s28
      %s31 = sshll.u32 %s1, 4
      %s32 = int_to_ptr.vmem [resolvable:$true] %s31
      %34 = dma.vmem_to_smem %s32, 16, [#allocation7], [#allocation6]
    $region9: #{tpu_custom_call.1} parent=1 // pred_fallthru
      _
    // Predicated region
    $region10: #{tpu_custom_call.1} parent=1 // pred_check
      _
    $region11: #{tpu_custom_call.1} parent=1 // pred_check_branch
      %36 = sbr.rel (0) target = $region13
    $region12: #{tpu_custom_call.1} parent=1 // pred_region
      %s38 = ssub.s32 16, 16
      %39 = vsyncadd [#allocation9], %s38
      %s41 = sshll.u32 %s2, 4
      %s42 = int_to_ptr.vmem [resolvable:$true] %s41
      %44 = dma.vmem_to_smem %s42, 16, [#allocation8], [#allocation9]
    $region13: #{tpu_custom_call.1} parent=1 // pred_fallthru
      _
    // Predicated region
    $region14: #{tpu_custom_call.1} parent=1 // pred_check
      _
    $region15: #{tpu_custom_call.1} parent=1 // pred_check_branch
      %46 = sbr.rel (0) target = $region17
    $region16: #{tpu_custom_call.1} parent=1 // pred_region
      %s48 = ssub.s32 16, 16
      %49 = vsyncadd [#allocation9], %s48
      %s51 = sshll.u32 %s3, 4
      %s52 = int_to_ptr.vmem [resolvable:$true] %s51
      %54 = dma.vmem_to_smem %s52, 16, [#allocation10], [#allocation9]
    $region17: #{tpu_custom_call.1} parent=1 // pred_fallthru
      _
    // Predicated region
    $region18: #{tpu_custom_call.1} parent=1 // pred_check
      _
    $region19: #{tpu_custom_call.1} parent=1 // pred_check_branch
      %56 = sbr.rel (0) target = $region21
    $region20: #{tpu_custom_call.1} parent=1 // pred_region
      _
    $region21: #{tpu_custom_call.1} parent=1 // pred_fallthru
      _
    // Predicated region
    $region22: #{tpu_custom_call.1} parent=1 // pred_check
      _
    $region23: #{tpu_custom_call.1} parent=1 // pred_check_branch
      %58 = sbr.rel (0) target = $region25
    $region24: #{tpu_custom_call.1} parent=1 // pred_region
      %59 = dma.done [#allocation4], 128
    $region25: #{tpu_custom_call.1} parent=1 // pred_fallthru
      _
    // Predicated region
    $region26: #{tpu_custom_call.1} parent=1 // pred_check
      _
    $region27: #{tpu_custom_call.1} parent=1 // pred_check_branch
      %61 = sbr.rel (0) target = $region29
    $region28: #{tpu_custom_call.1} parent=1 // pred_region
      %62 = dma.done [#allocation6], 16
    $region29: #{tpu_custom_call.1} parent=1 // pred_fallthru
      _
    // Predicated region
    $region30: #{tpu_custom_call.1} parent=1 // pred_check
      _
    $region31: #{tpu_custom_call.1} parent=1 // pred_check_branch
      %64 = sbr.rel (0) target = $region33
    $region32: #{tpu_custom_call.1} parent=1 // pred_region
      %65 = dma.done [#allocation9], 16
    $region33: #{tpu_custom_call.1} parent=1 // pred_fallthru
      _
    // Predicated region
    $region34: #{tpu_custom_call.1} parent=1 // pred_check
      _
    $region35: #{tpu_custom_call.1} parent=1 // pred_check_branch
      %67 = sbr.rel (0) target = $region37
    $region36: #{tpu_custom_call.1} parent=1 // pred_region
      %68 = dma.done [#allocation9], 16
    $region37: #{tpu_custom_call.1} parent=1 // pred_fallthru
      _
    %69 = sfence
    %v70 = vld [vmem:[#allocation3] sm:$0xff]
    %s71 = sld [smem:[#allocation10]]
    %s72 = sld [smem:[#allocation7]]
    %v73 = vstv %s72
    %v74 = vmul.f32 %v70, %v73
    %s75 = sld [smem:[#allocation8]]
    %v76 = vstv %s75
    %v77 = vadd.f32 %v74, %v76
    %v78 = vmax.f32 %v77, 0.0
    %v79 = vstv %s71
    %v80 = vmul.f32 %v79, %v78
    %s81 = sld [smem:[#allocation2]]
    %v82 = vstv %s81
    %v83 = vadd.f32 %v80, %v82
    %s84 = sld [smem:[#allocation10 + $0x1]]
    %s85 = sld [smem:[#allocation7 + $0x1]]
    %v86 = vstv %s85
    %v87 = vmul.f32 %v70, %v86
    %s88 = sld [smem:[#allocation8 + $0x1]]
    %v89 = vstv %s88
    %v90 = vadd.f32 %v87, %v89
    %v91 = vmax.f32 %v90, 0.0
    %v92 = vstv %s84
    %v93 = vmul.f32 %v92, %v91
    %v94 = vadd.f32 %v83, %v93
    %s95 = sld [smem:[#allocation10 + $0x2]]
    %s96 = sld [smem:[#allocation7 + $0x2]]
    %v97 = vstv %s96
    %v98 = vmul.f32 %v70, %v97
    %s99 = sld [smem:[#allocation8 + $0x2]]
    %v100 = vstv %s99
    %v101 = vadd.f32 %v98, %v100
    %v102 = vmax.f32 %v101, 0.0
    %v103 = vstv %s95
    %v104 = vmul.f32 %v103, %v102
    %v105 = vadd.f32 %v94, %v104
    %s106 = sld [smem:[#allocation10 + $0x3]]
    %s107 = sld [smem:[#allocation7 + $0x3]]
    %v108 = vstv %s107
    %v109 = vmul.f32 %v70, %v108
    %s110 = sld [smem:[#allocation8 + $0x3]]
    %v111 = vstv %s110
    %v112 = vadd.f32 %v109, %v111
    %v113 = vmax.f32 %v112, 0.0
    %v114 = vstv %s106
    %v115 = vmul.f32 %v114, %v113
    %v116 = vadd.f32 %v105, %v115
    %s117 = sld [smem:[#allocation10 + $0x4]]
    %s118 = sld [smem:[#allocation7 + $0x4]]
    %v119 = vstv %s118
    %v120 = vmul.f32 %v70, %v119
    %s121 = sld [smem:[#allocation8 + $0x4]]
    %v122 = vstv %s121
    %v123 = vadd.f32 %v120, %v122
    %v124 = vmax.f32 %v123, 0.0
    %v125 = vstv %s117
    %v126 = vmul.f32 %v125, %v124
    %v127 = vadd.f32 %v116, %v126
    %s128 = sld [smem:[#allocation10 + $0x5]]
    %s129 = sld [smem:[#allocation7 + $0x5]]
    %v130 = vstv %s129
    %v131 = vmul.f32 %v70, %v130
    %s132 = sld [smem:[#allocation8 + $0x5]]
    %v133 = vstv %s132
    %v134 = vadd.f32 %v131, %v133
    %v135 = vmax.f32 %v134, 0.0
    %v136 = vstv %s128
    %v137 = vmul.f32 %v136, %v135
    %v138 = vadd.f32 %v127, %v137
    %s139 = sld [smem:[#allocation10 + $0x6]]
    %s140 = sld [smem:[#allocation7 + $0x6]]
    %v141 = vstv %s140
    %v142 = vmul.f32 %v70, %v141
    %s143 = sld [smem:[#allocation8 + $0x6]]
    %v144 = vstv %s143
    %v145 = vadd.f32 %v142, %v144
    %v146 = vmax.f32 %v145, 0.0
    %v147 = vstv %s139
    %v148 = vmul.f32 %v147, %v146
    %v149 = vadd.f32 %v138, %v148
    %s150 = sld [smem:[#allocation10 + $0x7]]
    %s151 = sld [smem:[#allocation7 + $0x7]]
    %v152 = vstv %s151
    %v153 = vmul.f32 %v70, %v152
    %s154 = sld [smem:[#allocation8 + $0x7]]
    %v155 = vstv %s154
    %v156 = vadd.f32 %v153, %v155
    %v157 = vmax.f32 %v156, 0.0
    %v158 = vstv %s150
    %v159 = vmul.f32 %v158, %v157
    %v160 = vadd.f32 %v149, %v159
    %s161 = sld [smem:[#allocation10 + $0x8]]
    %s162 = sld [smem:[#allocation7 + $0x8]]
    %v163 = vstv %s162
    %v164 = vmul.f32 %v70, %v163
    %s165 = sld [smem:[#allocation8 + $0x8]]
    %v166 = vstv %s165
    %v167 = vadd.f32 %v164, %v166
    %v168 = vmax.f32 %v167, 0.0
    %v169 = vstv %s161
    %v170 = vmul.f32 %v169, %v168
    %v171 = vadd.f32 %v160, %v170
    %s172 = sld [smem:[#allocation10 + $0x9]]
    %s173 = sld [smem:[#allocation7 + $0x9]]
    %v174 = vstv %s173
    %v175 = vmul.f32 %v70, %v174
    %s176 = sld [smem:[#allocation8 + $0x9]]
    %v177 = vstv %s176
    %v178 = vadd.f32 %v175, %v177
    %v179 = vmax.f32 %v178, 0.0
    %v180 = vstv %s172
    %v181 = vmul.f32 %v180, %v179
    %v182 = vadd.f32 %v171, %v181
    %s183 = sld [smem:[#allocation10 + $0xa]]
    %s184 = sld [smem:[#allocation7 + $0xa]]
    %v185 = vstv %s184
    %v186 = vmul.f32 %v70, %v185
    %s187 = sld [smem:[#allocation8 + $0xa]]
    %v188 = vstv %s187
    %v189 = vadd.f32 %v186, %v188
    %v190 = vmax.f32 %v189, 0.0
    %v191 = vstv %s183
    %v192 = vmul.f32 %v191, %v190
    %v193 = vadd.f32 %v182, %v192
    %s194 = sld [smem:[#allocation10 + $0xb]]
    %s195 = sld [smem:[#allocation7 + $0xb]]
    %v196 = vstv %s195
    %v197 = vmul.f32 %v70, %v196
    %s198 = sld [smem:[#allocation8 + $0xb]]
    %v199 = vstv %s198
    %v200 = vadd.f32 %v197, %v199
    %v201 = vmax.f32 %v200, 0.0
    %v202 = vstv %s194
    %v203 = vmul.f32 %v202, %v201
    %v204 = vadd.f32 %v193, %v203
    %s205 = sld [smem:[#allocation10 + $0xc]]
    %s206 = sld [smem:[#allocation7 + $0xc]]
    %v207 = vstv %s206
    %v208 = vmul.f32 %v70, %v207
    %s209 = sld [smem:[#allocation8 + $0xc]]
    %v210 = vstv %s209
    %v211 = vadd.f32 %v208, %v210
    %v212 = vmax.f32 %v211, 0.0
    %v213 = vstv %s205
    %v214 = vmul.f32 %v213, %v212
    %v215 = vadd.f32 %v204, %v214
    %s216 = sld [smem:[#allocation10 + $0xd]]
    %s217 = sld [smem:[#allocation7 + $0xd]]
    %v218 = vstv %s217
    %v219 = vmul.f32 %v70, %v218
    %s220 = sld [smem:[#allocation8 + $0xd]]
    %v221 = vstv %s220
    %v222 = vadd.f32 %v219, %v221
    %v223 = vmax.f32 %v222, 0.0
    %v224 = vstv %s216
    %v225 = vmul.f32 %v224, %v223
    %v226 = vadd.f32 %v215, %v225
    %s227 = sld [smem:[#allocation10 + $0xe]]
    %s228 = sld [smem:[#allocation7 + $0xe]]
    %v229 = vstv %s228
    %v230 = vmul.f32 %v70, %v229
    %s231 = sld [smem:[#allocation8 + $0xe]]
    %v232 = vstv %s231
    %v233 = vadd.f32 %v230, %v232
    %v234 = vmax.f32 %v233, 0.0
    %v235 = vstv %s227
    %v236 = vmul.f32 %v235, %v234
    %v237 = vadd.f32 %v226, %v236
    %s238 = sld [smem:[#allocation10 + $0xf]]
    %s239 = sld [smem:[#allocation7 + $0xf]]
    %v240 = vstv %s239
    %v241 = vmul.f32 %v70, %v240
    %s242 = sld [smem:[#allocation8 + $0xf]]
    %v243 = vstv %s242
    %v244 = vadd.f32 %v241, %v243
    %v245 = vmax.f32 %v244, 0.0
    %v246 = vstv %s238
    %v247 = vmul.f32 %v246, %v245
    %v248 = vadd.f32 %v237, %v247
    %s249 = sld [smem:[#allocation10 + $0x10]]
    %s250 = sld [smem:[#allocation7 + $0x10]]
    %v251 = vstv %s250
    %v252 = vmul.f32 %v70, %v251
    %s253 = sld [smem:[#allocation8 + $0x10]]
    %v254 = vstv %s253
    %v255 = vadd.f32 %v252, %v254
    %v256 = vmax.f32 %v255, 0.0
    %v257 = vstv %s249
    %v258 = vmul.f32 %v257, %v256
    %v259 = vadd.f32 %v248, %v258
    %s260 = sld [smem:[#allocation10 + $0x11]]
    %s261 = sld [smem:[#allocation7 + $0x11]]
    %v262 = vstv %s261
    %v263 = vmul.f32 %v70, %v262
    %s264 = sld [smem:[#allocation8 + $0x11]]
    %v265 = vstv %s264
    %v266 = vadd.f32 %v263, %v265
    %v267 = vmax.f32 %v266, 0.0
    %v268 = vstv %s260
    %v269 = vmul.f32 %v268, %v267
    %v270 = vadd.f32 %v259, %v269
    %s271 = sld [smem:[#allocation10 + $0x12]]
    %s272 = sld [smem:[#allocation7 + $0x12]]
    %v273 = vstv %s272
    %v274 = vmul.f32 %v70, %v273
    %s275 = sld [smem:[#allocation8 + $0x12]]
    %v276 = vstv %s275
    %v277 = vadd.f32 %v274, %v276
    %v278 = vmax.f32 %v277, 0.0
    %v279 = vstv %s271
    %v280 = vmul.f32 %v279, %v278
    %v281 = vadd.f32 %v270, %v280
    %s282 = sld [smem:[#allocation10 + $0x13]]
    %s283 = sld [smem:[#allocation7 + $0x13]]
    %v284 = vstv %s283
    %v285 = vmul.f32 %v70, %v284
    %s286 = sld [smem:[#allocation8 + $0x13]]
    %v287 = vstv %s286
    %v288 = vadd.f32 %v285, %v287
    %v289 = vmax.f32 %v288, 0.0
    %v290 = vstv %s282
    %v291 = vmul.f32 %v290, %v289
    %v292 = vadd.f32 %v281, %v291
    %s293 = sld [smem:[#allocation10 + $0x14]]
    %s294 = sld [smem:[#allocation7 + $0x14]]
    %v295 = vstv %s294
    %v296 = vmul.f32 %v70, %v295
    %s297 = sld [smem:[#allocation8 + $0x14]]
    %v298 = vstv %s297
    %v299 = vadd.f32 %v296, %v298
    %v300 = vmax.f32 %v299, 0.0
    %v301 = vstv %s293
    %v302 = vmul.f32 %v301, %v300
    %v303 = vadd.f32 %v292, %v302
    %s304 = sld [smem:[#allocation10 + $0x15]]
    %s305 = sld [smem:[#allocation7 + $0x15]]
    %v306 = vstv %s305
    %v307 = vmul.f32 %v70, %v306
    %s308 = sld [smem:[#allocation8 + $0x15]]
    %v309 = vstv %s308
    %v310 = vadd.f32 %v307, %v309
    %v311 = vmax.f32 %v310, 0.0
    %v312 = vstv %s304
    %v313 = vmul.f32 %v312, %v311
    %v314 = vadd.f32 %v303, %v313
    %s315 = sld [smem:[#allocation10 + $0x16]]
    %s316 = sld [smem:[#allocation7 + $0x16]]
    %v317 = vstv %s316
    %v318 = vmul.f32 %v70, %v317
    %s319 = sld [smem:[#allocation8 + $0x16]]
    %v320 = vstv %s319
    %v321 = vadd.f32 %v318, %v320
    %v322 = vmax.f32 %v321, 0.0
    %v323 = vstv %s315
    %v324 = vmul.f32 %v323, %v322
    %v325 = vadd.f32 %v314, %v324
    %s326 = sld [smem:[#allocation10 + $0x17]]
    %s327 = sld [smem:[#allocation7 + $0x17]]
    %v328 = vstv %s327
    %v329 = vmul.f32 %v70, %v328
    %s330 = sld [smem:[#allocation8 + $0x17]]
    %v331 = vstv %s330
    %v332 = vadd.f32 %v329, %v331
    %v333 = vmax.f32 %v332, 0.0
    %v334 = vstv %s326
    %v335 = vmul.f32 %v334, %v333
    %v336 = vadd.f32 %v325, %v335
    %s337 = sld [smem:[#allocation10 + $0x18]]
    %s338 = sld [smem:[#allocation7 + $0x18]]
    %v339 = vstv %s338
    %v340 = vmul.f32 %v70, %v339
    %s341 = sld [smem:[#allocation8 + $0x18]]
    %v342 = vstv %s341
    %v343 = vadd.f32 %v340, %v342
    %v344 = vmax.f32 %v343, 0.0
    %v345 = vstv %s337
    %v346 = vmul.f32 %v345, %v344
    %v347 = vadd.f32 %v336, %v346
    %s348 = sld [smem:[#allocation10 + $0x19]]
    %s349 = sld [smem:[#allocation7 + $0x19]]
    %v350 = vstv %s349
    %v351 = vmul.f32 %v70, %v350
    %s352 = sld [smem:[#allocation8 + $0x19]]
    %v353 = vstv %s352
    %v354 = vadd.f32 %v351, %v353
    %v355 = vmax.f32 %v354, 0.0
    %v356 = vstv %s348
    %v357 = vmul.f32 %v356, %v355
    %v358 = vadd.f32 %v347, %v357
    %s359 = sld [smem:[#allocation10 + $0x1a]]
    %s360 = sld [smem:[#allocation7 + $0x1a]]
    %v361 = vstv %s360
    %v362 = vmul.f32 %v70, %v361
    %s363 = sld [smem:[#allocation8 + $0x1a]]
    %v364 = vstv %s363
    %v365 = vadd.f32 %v362, %v364
    %v366 = vmax.f32 %v365, 0.0
    %v367 = vstv %s359
    %v368 = vmul.f32 %v367, %v366
    %v369 = vadd.f32 %v358, %v368
    %s370 = sld [smem:[#allocation10 + $0x1b]]
    %s371 = sld [smem:[#allocation7 + $0x1b]]
    %v372 = vstv %s371
    %v373 = vmul.f32 %v70, %v372
    %s374 = sld [smem:[#allocation8 + $0x1b]]
    %v375 = vstv %s374
    %v376 = vadd.f32 %v373, %v375
    %v377 = vmax.f32 %v376, 0.0
    %v378 = vstv %s370
    %v379 = vmul.f32 %v378, %v377
    %v380 = vadd.f32 %v369, %v379
    %s381 = sld [smem:[#allocation10 + $0x1c]]
    %s382 = sld [smem:[#allocation7 + $0x1c]]
    %v383 = vstv %s382
    %v384 = vmul.f32 %v70, %v383
    %s385 = sld [smem:[#allocation8 + $0x1c]]
    %v386 = vstv %s385
    %v387 = vadd.f32 %v384, %v386
    %v388 = vmax.f32 %v387, 0.0
    %v389 = vstv %s381
    %v390 = vmul.f32 %v389, %v388
    %v391 = vadd.f32 %v380, %v390
    %s392 = sld [smem:[#allocation10 + $0x1d]]
    %s393 = sld [smem:[#allocation7 + $0x1d]]
    %v394 = vstv %s393
    %v395 = vmul.f32 %v70, %v394
    %s396 = sld [smem:[#allocation8 + $0x1d]]
    %v397 = vstv %s396
    %v398 = vadd.f32 %v395, %v397
    %v399 = vmax.f32 %v398, 0.0
    %v400 = vstv %s392
    %v401 = vmul.f32 %v400, %v399
    %v402 = vadd.f32 %v391, %v401
    %s403 = sld [smem:[#allocation10 + $0x1e]]
    %s404 = sld [smem:[#allocation7 + $0x1e]]
    %v405 = vstv %s404
    %v406 = vmul.f32 %v70, %v405
    %s407 = sld [smem:[#allocation8 + $0x1e]]
    %v408 = vstv %s407
    %v409 = vadd.f32 %v406, %v408
    %v410 = vmax.f32 %v409, 0.0
    %v411 = vstv %s403
    %v412 = vmul.f32 %v411, %v410
    %v413 = vadd.f32 %v402, %v412
    %s414 = sld [smem:[#allocation10 + $0x1f]]
    %s415 = sld [smem:[#allocation7 + $0x1f]]
    %v416 = vstv %s415
    %v417 = vmul.f32 %v70, %v416
    %s418 = sld [smem:[#allocation8 + $0x1f]]
    %v419 = vstv %s418
    %v420 = vadd.f32 %v417, %v419
    %v421 = vmax.f32 %v420, 0.0
    %v422 = vstv %s414
    %v423 = vmul.f32 %v422, %v421
    %v424 = vadd.f32 %v413, %v423
    %425 = vst [vmem:[#allocation11] sm:$0xff] %v424
    // Predicated region
    $region38: #{tpu_custom_call.1} parent=1 // pred_check
      _
    $region39: #{tpu_custom_call.1} parent=1 // pred_check_branch
      %427 = sbr.rel (0) target = $region41
    $region40: #{tpu_custom_call.1} parent=1 // pred_region
      %s429 = ssub.s32 128, 128
      %430 = vsyncadd [#allocation5], %s429
      %s432 = sshll.u32 [#allocation11], 4
      %s433 = int_to_ptr.vmem [resolvable:$true] %s432
      %435 = dma.vmem_to_hbm [thread:$0]  %s433, 128, %s5, [#allocation5]
    $region41: #{tpu_custom_call.1} parent=1 // pred_fallthru
      _
    // Predicated region
    $region42: #{tpu_custom_call.1} parent=1 // pred_check
      _
    $region43: #{tpu_custom_call.1} parent=1 // pred_check_branch
      %437 = sbr.rel (0) target = $region45
    $region44: #{tpu_custom_call.1} parent=1 // pred_region
      %438 = dma.done [#allocation5], 128
    $region45: #{tpu_custom_call.1} parent=1 // pred_fallthru
      _
    %439 = vsyncpa [#allocation4], 1
    %440 = vsyncpa [#allocation5], 1
    %441 = vsyncpa [#allocation6], 1
    %442 = vsyncpa [#allocation9], 1

</llo_original>
